<compile_context>
chip_gen: v7x
topology: tpu7x:2x2x1
jax: 0.10.0
libtpu: 0.0.40
codegen_flags: <defaults>
</compile_context>

<pallas_src>
import jax
import jax.numpy as jnp
from jax.experimental import pallas as pl
from jax.experimental.pallas import tpu as pltpu

D_MODEL = 64
NUM_CLASSES = 2
MEM_HIDDEN = 2 * D_MODEL          # 128
CLS_PAD = 128                     # lane-dense classifier width (logits padded)
LOSS_LANE = NUM_CLASSES           # padded lane used to smuggle the loss partial

# ---- packed weight slab A: (D_MODEL, n) matrices, column offsets 128-aligned
W_OFF_KVQ = 0                     # memory k/v/q projection  (192 cols, pad->256)
W_OFF_MLP1 = 256                  # memory MLP layer 1       (128 cols)
W_OFF_AQKV = 384                  # attention q/k/v          (192 cols, pad->256)
W_OFF_WO = 640                    # attention output proj    (64 cols, pad->128)
W_OFF_WC = 768                    # classifier (zero-padded) (128 cols)
W_SLAB_N = 896

# ---- packed bias slab: (1, n) vectors, column offsets 128-aligned ----------
B_OFF_KVQ = 0                     # 192 -> pad 256
B_OFF_B1 = 256                    # 128
B_OFF_B2 = 384                    # 64  -> pad 128
B_OFF_AQKV = 512                  # 192 -> pad 256
B_OFF_BO = 768                    # 64  -> pad 128
B_OFF_G = 896                     # 64  -> pad 128
B_OFF_BE = 1024                   # 64  -> pad 128
B_OFF_BC = 1152                   # 128
B_SLAB_N = 1280


def _mal_block_kernel(x_ref, wa_ref, w2_ref, b_ref, logits_ref):
    D = D_MODEL
    H = MEM_HIDDEN
    TB, S, _ = x_ref.shape
    M = TB * S
    xt = x_ref[...].reshape(M, D)             # (M, D) bf16 — streamed as bf16

    def bias(off, n):                         # (1, n) f32 slice of the bias slab
        return b_ref[:, off:off + n]

    # ---- NeuralMemory: fused k/v/q projection (one (M,D)x(D,3D) MXU op) ----
    kvq = jnp.dot(xt, wa_ref[:, W_OFF_KVQ:W_OFF_KVQ + 3 * D],
                  preferred_element_type=jnp.float32) + bias(B_OFF_KVQ, 3 * D)
    k = kvq[:, 0:D]
    v = kvq[:, D:2 * D]
    q = kvq[:, 2 * D:3 * D]

    # ---- memory MLP run once on concat(k, q) rows (halves MXU launches) ----
    # TODO(synk): on v5e, split back into two M-row passes if spills show up.
    kq = jnp.concatenate([k, q], axis=0).astype(jnp.bfloat16)      # (2M, D)
    h = jnp.dot(kq, wa_ref[:, W_OFF_MLP1:W_OFF_MLP1 + H],
                preferred_element_type=jnp.float32) + bias(B_OFF_B1, H)
    h = h * jax.nn.sigmoid(h)                                      # SiLU in f32
    mlp = jnp.dot(h.astype(jnp.bfloat16), w2_ref[...],
                  preferred_element_type=jnp.float32) + bias(B_OFF_B2, D)
    pred = mlp[0:M]                 # mem_mlp(k): surprise prediction
    mem_out = mlp[M:2 * M]          # mem_mlp(q): memory read

    # ---- surprise (MSE) loss partial, computed early so kvq/h die here -----
    diff = pred - v
    sq_sum = jnp.sum(diff * diff)   # normalized by B*S*D in the wrapper

    # ---- single-head self-attention over the memory output -----------------
    # 1/sqrt(D) is already folded into the wqa / bqa slab columns at pack time.
    aqkv = jnp.dot(mem_out.astype(jnp.bfloat16),
                   wa_ref[:, W_OFF_AQKV:W_OFF_AQKV + 3 * D],
                   preferred_element_type=jnp.float32) + bias(B_OFF_AQKV, 3 * D)
    qa = aqkv[:, 0:D].reshape(TB, S, D).astype(jnp.bfloat16)
    ka = aqkv[:, D:2 * D].reshape(TB, S, D).astype(jnp.bfloat16)
    va = aqkv[:, 2 * D:3 * D].reshape(TB, S, D).astype(jnp.bfloat16)

    # Batched per-sequence attention (no O(M^2) block-diagonal work).
    # TODO(synk): no padding-token / causal mask — the reference MALModule
    # source was not provided; attention is full within each sequence.
    scores = jnp.einsum('bqd,bkd->bqk', qa, ka,
                        preferred_element_type=jnp.float32)        # (TB, S, S)
    m = jnp.max(scores, axis=-1, keepdims=True)
    p = jnp.exp(scores - m)
    denom = jnp.sum(p, axis=-1, keepdims=True)
    p = p * pl.reciprocal(denom, approx=True)                      # EUP divide
    attn = jnp.einsum('bqk,bkd->bqd', p.astype(jnp.bfloat16), va,
                      preferred_element_type=jnp.float32).reshape(M, D)
    attn = jnp.dot(attn.astype(jnp.bfloat16),
                   wa_ref[:, W_OFF_WO:W_OFF_WO + D],
                   preferred_element_type=jnp.float32) + bias(B_OFF_BO, D)

    # ---- residual + LayerNorm (f32) -----------------------------------------
    y = mem_out + attn
    mu = jnp.mean(y, axis=-1, keepdims=True)
    var = jnp.mean((y - mu) ** 2, axis=-1, keepdims=True)
    yn = (y - mu) * jax.lax.rsqrt(var + 1e-5)
    out = yn * bias(B_OFF_G, D) + bias(B_OFF_BE, D)                # gamma / beta

    # ---- mean pool over sequence + classifier head (lane-padded to 128) -----
    pooled = jnp.mean(out.reshape(TB, S, D), axis=1)               # (TB, D)
    logits = jnp.dot(pooled.astype(jnp.bfloat16),
                     wa_ref[:, W_OFF_WC:W_OFF_WC + CLS_PAD],
                     preferred_element_type=jnp.float32) + bias(B_OFF_BC, CLS_PAD)

    # Stash the per-block loss partial in an unused padded lane of row 0 so we
    # need no separate 1-sublane output stream (wrapper extracts + reduces it).
    row = jax.lax.broadcasted_iota(jnp.int32, (TB, CLS_PAD), 0)
    col = jax.lax.broadcasted_iota(jnp.int32, (TB, CLS_PAD), 1)
    logits = jnp.where(jnp.logical_and(row == 0, col == LOSS_LANE), sq_sum, logits)
    logits_ref[...] = logits.reshape(1, TB, CLS_PAD)


def _pack_params(params):
    """Pack params into 2 bf16 weight slabs + 1 f32 bias slab, 128-aligned."""
    D = D_MODEL
    inv_sqrt_d = 1.0 / (D ** 0.5)

    def pad_to(a, width):
        return jnp.pad(a, ((0, 0), (0, width - a.shape[1])))

    wa = jnp.concatenate([
        pad_to(jnp.concatenate([params['wk'], params['wv'], params['wq']], 1), 256),
        params['w1'],                                                     # 128
        pad_to(jnp.concatenate([params['wqa'] * inv_sqrt_d,              # fold 1/sqrt(D)
                                params['wka'], params['wva']], 1), 256),
        pad_to(params['wo'], 128),
        pad_to(params['wc'], CLS_PAD),
    ], axis=1).astype(jnp.bfloat16)                                       # (D, 896)
    assert wa.shape == (D, W_SLAB_N)

    w2 = params['w2'].astype(jnp.bfloat16)                                # (H, D)

    b = jnp.concatenate([
        pad_to(jnp.concatenate([params['bk'], params['bv'], params['bq']], 1), 256),
        params['b1'],                                                     # 128
        pad_to(params['b2'], 128),
        pad_to(jnp.concatenate([params['bqa'] * inv_sqrt_d,
                                params['bka'], params['bva']], 1), 256),
        pad_to(params['bo'], 128),
        pad_to(params['gamma'], 128),
        pad_to(params['beta'], 128),
        pad_to(params['bc'], CLS_PAD),
    ], axis=1).astype(jnp.float32)                                        # (1, 1280)
    assert b.shape == (1, B_SLAB_N)
    return wa, w2, b


def _token_cap():
    """Per-step token budget: 128 on v5e (128-deep MXU), 256 on v6e/v7x."""
    try:
        kind = jax.devices()[0].device_kind.lower()
    except Exception:
        return 256
    if "v5 lite" in kind or "v5e" in kind:
        return 128
    return 256


def titan_classifier_mal(input_ids, params, *, block_b=None):
    """Forward pass: returns (logits (B, NUM_CLASSES), mem_loss scalar)."""
    emb = params['embedding']
    B, S = input_ids.shape
    D = D_MODEL
    # TODO(synk): the embedding gather could move in-kernel (scalar-prefetched
    # input_ids + pl.Element row-gather on the embedding table); left as XLA
    # glue at toy size. Activations are cast to bf16 here so the kernel streams
    # half the bytes per step.
    x = jnp.take(emb, input_ids, axis=0).astype(jnp.bfloat16)            # (B, S, D)

    if block_b is None:
        cap = max(1, _token_cap() // S)
        divisors = [d for d in range(1, min(B, cap) + 1) if B % d == 0]
        # Prefer >= 2 grid steps so the "parallel" axis can shard across the
        # two TensorCores on v7x.
        pref = [d for d in divisors if B // d >= 2]
        block_b = max(pref) if pref else max(divisors)
    assert B % block_b == 0
    num_blocks = B // block_b

    wa, w2, b = _pack_params(params)

    # Advisory cost estimate for the surrounding XLA scheduler.
    M = B * S
    flops = int(2 * M * D * 3 * D                               # fused mem kvq
                + 2 * (2 * M) * D * MEM_HIDDEN                  # mem MLP 1
                + 2 * (2 * M) * MEM_HIDDEN * D                  # mem MLP 2
                + 2 * M * D * 3 * D                             # fused attn qkv
                + 2 * B * S * S * D * 2                         # scores + p@v
                + 2 * M * D * D                                 # attn out proj
                + 2 * B * D * CLS_PAD)                          # classifier
    transcendentals = int(2 * M * MEM_HIDDEN + B * S * S)       # sigmoid + exp
    bytes_accessed = int(x.size * 2 + wa.size * 2 + w2.size * 2 + b.size * 4
                         + B * CLS_PAD * 4)

    grid_spec = pltpu.PrefetchScalarGridSpec(
        num_scalar_prefetch=0,
        grid=(num_blocks,),
        in_specs=[
            pl.BlockSpec((block_b, S, D), lambda i: (i, 0, 0)),     # activations
            pl.BlockSpec((D, W_SLAB_N), lambda i: (0, 0)),          # weight slab
            pl.BlockSpec((MEM_HIDDEN, D), lambda i: (0, 0)),        # mem MLP W2
            pl.BlockSpec((1, B_SLAB_N), lambda i: (0, 0)),          # bias slab
        ],
        out_specs=pl.BlockSpec((1, block_b, CLS_PAD), lambda i: (i, 0, 0)),
    )
    logits_pad = pl.pallas_call(
        _mal_block_kernel,
        grid_spec=grid_spec,
        out_shape=jax.ShapeDtypeStruct((num_blocks, block_b, CLS_PAD), jnp.float32),
        compiler_params=pltpu.CompilerParams(
            dimension_semantics=("parallel",),   # batch-block axis -> megacore
        ),
        cost_estimate=pl.CostEstimate(
            flops=flops, transcendentals=transcendentals,
            bytes_accessed=bytes_accessed),
    )(x, wa, w2, b)

    logits = logits_pad.reshape(B, CLS_PAD)[:, :NUM_CLASSES]
    # Loss partials were stashed in padded lane LOSS_LANE of row 0 of each block.
    mem_loss = jnp.sum(logits_pad[:, 0, LOSS_LANE]) / (B * S * D)
    return logits, mem_loss


def init_params(key, vocab_size, d_model=D_MODEL, num_classes=NUM_CLASSES,
                mem_hidden=MEM_HIDDEN):
    keys = jax.random.split(key, 16)
    sd = 0.02

    def w(k, shape):
        return (sd * jax.random.normal(k, shape)).astype(jnp.float32)

    z = lambda n: jnp.zeros((1, n), jnp.float32)
    return {
        'embedding': w(keys[0], (vocab_size, d_model)),
        'wk': w(keys[1], (d_model, d_model)),    'bk': z(d_model),
        'wv': w(keys[2], (d_model, d_model)),    'bv': z(d_model),
        'wq': w(keys[3], (d_model, d_model)),    'bq': z(d_model),
        'w1': w(keys[4], (d_model, mem_hidden)), 'b1': z(mem_hidden),
        'w2': w(keys[5], (mem_hidden, d_model)), 'b2': z(d_model),
        'wqa': w(keys[6], (d_model, d_model)),   'bqa': z(d_model),
        'wka': w(keys[7], (d_model, d_model)),   'bka': z(d_model),
        'wva': w(keys[8], (d_model, d_model)),   'bva': z(d_model),
        'wo': w(keys[9], (d_model, d_model)),    'bo': z(d_model),
        'gamma': jnp.ones((1, d_model), jnp.float32),
        'beta': jnp.zeros((1, d_model), jnp.float32),
        'wc': w(keys[10], (d_model, num_classes)), 'bc': z(num_classes),
    }


if __name__ == "__main__":
    key = jax.random.PRNGKey(0)
    k_params, k_ids = jax.random.split(key)

    VOCAB = 1000      # small synthetic vocab (tokenizer vocab stand-in)
    B, S = 4, 8       # batch=4, seq_len=8, d_model=64, num_classes=2

    params = init_params(k_params, VOCAB)
    input_ids = jax.random.randint(k_ids, (B, S), 0, VOCAB, dtype=jnp.int32)

    # block_b=2 -> a 2-step grid, exercising the batch-tiled ("parallel") path.
    logits, mem_loss = titan_classifier_mal(input_ids, params, block_b=2)
    jax.block_until_ready((logits, mem_loss))

    assert logits.shape == (B, NUM_CLASSES)
    assert mem_loss.shape == ()
    assert bool(jnp.all(jnp.isfinite(logits)))
    assert bool(jnp.isfinite(mem_loss))

    # Also exercise the default (device-dependent) block-size selection.
    logits2, mem_loss2 = titan_classifier_mal(input_ids, params)
    jax.block_until_ready((logits2, mem_loss2))
    assert bool(jnp.allclose(logits, logits2, atol=1e-3, rtol=1e-3))
    assert bool(jnp.allclose(mem_loss, mem_loss2, atol=1e-4, rtol=1e-3))
    print("KERNEL_OK")
</pallas_src>

<mosaic_0001>
module attributes {stable_mosaic.version = 11 : i64} {
  func.func @_mal_block_kernel(%arg0: i32, %arg1: memref<2x8x64xbf16, #tpu.memory_space<vmem>>, %arg2: memref<64x896xbf16, #tpu.memory_space<vmem>>, %arg3: memref<128x64xbf16, #tpu.memory_space<vmem>>, %arg4: memref<1x1280xf32, #tpu.memory_space<vmem>>, %arg5: memref<1x2x128xf32, #tpu.memory_space<vmem>>) attributes {dimension_semantics = [#tpu.dimension_semantics<parallel>], iteration_bounds = array<i64: 2>, scalar_prefetch = 0 : i64, scratch_operands = 0 : i64, tpu.core_type = #tpu.core_type<tc>, window_params = [{transform_indices = @transform_0, window_bounds = array<i64: 2, 8, 64>}, {pipeline_mode = #tpu.pipeline_mode<synchronous>, transform_indices = @transform_1, window_bounds = array<i64: 64, 896>}, {pipeline_mode = #tpu.pipeline_mode<synchronous>, transform_indices = @transform_2, window_bounds = array<i64: 128, 64>}, {pipeline_mode = #tpu.pipeline_mode<synchronous>, transform_indices = @transform_3, window_bounds = array<i64: 1, 1280>}, {transform_indices = @transform_4, window_bounds = array<i64: 1, 2, 128>}]} {
    %c0 = arith.constant 0 : index
    %c0_0 = arith.constant 0 : index
    %c0_1 = arith.constant 0 : index
    %0 = vector.load %arg1[%c0, %c0_0, %c0_1] : memref<2x8x64xbf16, #tpu.memory_space<vmem>>, vector<2x8x64xbf16>
    %1 = vector.shape_cast %0 : vector<2x8x64xbf16> to vector<16x64xbf16>
    %c0_2 = arith.constant 0 : index
    %c0_3 = arith.constant 0 : index
    %2 = vector.load %arg2[%c0_2, %c0_3] : memref<64x896xbf16, #tpu.memory_space<vmem>>, vector<64x192xbf16>
    %cst = arith.constant dense<0.000000e+00> : vector<16x192xf32>
    %3 = tpu.matmul %1, %2, %cst {dimension_numbers = #tpu.dot_dimension_numbers<[1], [0], [0], [1], [0, 0, 1, 1], [], []>} : vector<16x64xbf16>, vector<64x192xbf16>, vector<16x192xf32> -> vector<16x192xf32>
    %c0_4 = arith.constant 0 : index
    %c0_5 = arith.constant 0 : index
    %4 = vector.load %arg4[%c0_4, %c0_5] : memref<1x1280xf32, #tpu.memory_space<vmem>>, vector<1x192xf32>
    %5 = vector.broadcast %4 : vector<1x192xf32> to vector<16x192xf32>
    %6 = arith.addf %3, %5 : vector<16x192xf32>
    %7 = vector.extract_strided_slice %6 {offsets = [0, 0], sizes = [16, 64], strides = [1, 1]} : vector<16x192xf32> to vector<16x64xf32>
    %8 = vector.extract_strided_slice %6 {offsets = [0, 64], sizes = [16, 64], strides = [1, 1]} : vector<16x192xf32> to vector<16x64xf32>
    %9 = vector.extract_strided_slice %6 {offsets = [0, 128], sizes = [16, 64], strides = [1, 1]} : vector<16x192xf32> to vector<16x64xf32>
    %10 = tpu.concatenate %7, %9 in 0 : vector<16x64xf32>, vector<16x64xf32> -> vector<32x64xf32>
    %11 = arith.truncf %10 : vector<32x64xf32> to vector<32x64xbf16>
    %c0_6 = arith.constant 0 : index
    %c256 = arith.constant 256 : index
    %12 = vector.load %arg2[%c0_6, %c256] : memref<64x896xbf16, #tpu.memory_space<vmem>>, vector<64x128xbf16>
    %cst_7 = arith.constant dense<0.000000e+00> : vector<32x128xf32>
    %13 = tpu.matmul %11, %12, %cst_7 {dimension_numbers = #tpu.dot_dimension_numbers<[1], [0], [0], [1], [0, 0, 1, 1], [], []>} : vector<32x64xbf16>, vector<64x128xbf16>, vector<32x128xf32> -> vector<32x128xf32>
    %c0_8 = arith.constant 0 : index
    %c256_9 = arith.constant 256 : index
    %14 = vector.load %arg4[%c0_8, %c256_9] : memref<1x1280xf32, #tpu.memory_space<vmem>>, vector<1x128xf32>
    %15 = vector.broadcast %14 : vector<1x128xf32> to vector<32x128xf32>
    %16 = arith.addf %13, %15 : vector<32x128xf32>
    %17 = arith.negf %16 : vector<32x128xf32>
    %18 = math.exp %17 : vector<32x128xf32>
    %cst_10 = arith.constant 1.000000e+00 : f32
    %19 = vector.broadcast %cst_10 : f32 to vector<32x128xf32>
    %20 = arith.addf %19, %18 : vector<32x128xf32>
    %21 = arith.divf %19, %20 : vector<32x128xf32>
    %22 = arith.mulf %16, %21 : vector<32x128xf32>
    %23 = arith.truncf %22 : vector<32x128xf32> to vector<32x128xbf16>
    %c0_11 = arith.constant 0 : index
    %c0_12 = arith.constant 0 : index
    %24 = vector.load %arg3[%c0_11, %c0_12] : memref<128x64xbf16, #tpu.memory_space<vmem>>, vector<128x64xbf16>
    %cst_13 = arith.constant dense<0.000000e+00> : vector<32x64xf32>
    %25 = tpu.matmul %23, %24, %cst_13 {dimension_numbers = #tpu.dot_dimension_numbers<[1], [0], [0], [1], [0, 0, 1, 1], [], []>} : vector<32x128xbf16>, vector<128x64xbf16>, vector<32x64xf32> -> vector<32x64xf32>
    %c0_14 = arith.constant 0 : index
    %c384 = arith.constant 384 : index
    %26 = vector.load %arg4[%c0_14, %c384] : memref<1x1280xf32, #tpu.memory_space<vmem>>, vector<1x64xf32>
    %27 = vector.broadcast %26 : vector<1x64xf32> to vector<32x64xf32>
    %28 = arith.addf %25, %27 : vector<32x64xf32>
    %29 = vector.extract_strided_slice %28 {offsets = [0, 0], sizes = [16, 64], strides = [1, 1]} : vector<32x64xf32> to vector<16x64xf32>
    %30 = vector.extract_strided_slice %28 {offsets = [16, 0], sizes = [16, 64], strides = [1, 1]} : vector<32x64xf32> to vector<16x64xf32>
    %31 = arith.subf %29, %8 : vector<16x64xf32>
    %32 = arith.mulf %31, %31 : vector<16x64xf32>
    %33 = vector.shape_cast %32 : vector<16x64xf32> to vector<1x16x64xf32>
    %cst_15 = arith.constant dense<0.000000e+00> : vector<1xf32>
    %34 = vector.multi_reduction <add>, %33, %cst_15 [1, 2] : vector<1x16x64xf32> to vector<1xf32>
    %35 = vector.shape_cast %34 : vector<1xf32> to vector<1x1x1xf32>
    %36 = vector.extract %35[0, 0, 0] : f32 from vector<1x1x1xf32>
    %37 = arith.truncf %30 : vector<16x64xf32> to vector<16x64xbf16>
    %c0_16 = arith.constant 0 : index
    %c384_17 = arith.constant 384 : index
    %38 = vector.load %arg2[%c0_16, %c384_17] : memref<64x896xbf16, #tpu.memory_space<vmem>>, vector<64x192xbf16>
    %cst_18 = arith.constant dense<0.000000e+00> : vector<16x192xf32>
    %39 = tpu.matmul %37, %38, %cst_18 {dimension_numbers = #tpu.dot_dimension_numbers<[1], [0], [0], [1], [0, 0, 1, 1], [], []>} : vector<16x64xbf16>, vector<64x192xbf16>, vector<16x192xf32> -> vector<16x192xf32>
    %c0_19 = arith.constant 0 : index
    %c512 = arith.constant 512 : index
    %40 = vector.load %arg4[%c0_19, %c512] : memref<1x1280xf32, #tpu.memory_space<vmem>>, vector<1x192xf32>
    %41 = vector.broadcast %40 : vector<1x192xf32> to vector<16x192xf32>
    %42 = arith.addf %39, %41 : vector<16x192xf32>
    %43 = vector.extract_strided_slice %42 {offsets = [0, 0], sizes = [16, 64], strides = [1, 1]} : vector<16x192xf32> to vector<16x64xf32>
    %44 = vector.shape_cast %43 : vector<16x64xf32> to vector<2x8x64xf32>
    %45 = arith.truncf %44 : vector<2x8x64xf32> to vector<2x8x64xbf16>
    %46 = vector.extract_strided_slice %42 {offsets = [0, 64], sizes = [16, 64], strides = [1, 1]} : vector<16x192xf32> to vector<16x64xf32>
    %47 = vector.shape_cast %46 : vector<16x64xf32> to vector<2x8x64xf32>
    %48 = arith.truncf %47 : vector<2x8x64xf32> to vector<2x8x64xbf16>
    %49 = vector.extract_strided_slice %42 {offsets = [0, 128], sizes = [16, 64], strides = [1, 1]} : vector<16x192xf32> to vector<16x64xf32>
    %50 = vector.shape_cast %49 : vector<16x64xf32> to vector<2x8x64xf32>
    %51 = arith.truncf %50 : vector<2x8x64xf32> to vector<2x8x64xbf16>
    "tpu.trace_start"() <{level = 10 : i32, message = "bqd,bkd->bqk"}> : () -> ()
    %cst_20 = arith.constant dense<0.000000e+00> : vector<2x8x8xf32>
    %52 = tpu.matmul %45, %48, %cst_20 {dimension_numbers = #tpu.dot_dimension_numbers<[2], [2], [1], [1], [0, 0, 0, 1, 1, 1], [0], [0]>} : vector<2x8x64xbf16>, vector<2x8x64xbf16>, vector<2x8x8xf32> -> vector<2x8x8xf32>
    "tpu.trace_stop"() : () -> ()
    %cst_21 = arith.constant dense<0xFF800000> : vector<2x8xf32>
    %53 = vector.multi_reduction <maximumf>, %52, %cst_21 [2] : vector<2x8x8xf32> to vector<2x8xf32>
    %54 = vector.shape_cast %53 : vector<2x8xf32> to vector<2x8x1xf32>
    %55 = vector.broadcast %54 : vector<2x8x1xf32> to vector<2x8x8xf32>
    %56 = arith.subf %52, %55 : vector<2x8x8xf32>
    %57 = math.exp %56 : vector<2x8x8xf32>
    %cst_22 = arith.constant dense<0.000000e+00> : vector<2x8xf32>
    %58 = vector.multi_reduction <add>, %57, %cst_22 [2] : vector<2x8x8xf32> to vector<2x8xf32>
    %59 = vector.shape_cast %58 : vector<2x8xf32> to vector<2x8x1xf32>
    %60 = tpu.reciprocal %59 {approx = true} : vector<2x8x1xf32> -> vector<2x8x1xf32>
    %61 = vector.broadcast %60 : vector<2x8x1xf32> to vector<2x8x8xf32>
    %62 = arith.mulf %57, %61 : vector<2x8x8xf32>
    %63 = arith.truncf %62 : vector<2x8x8xf32> to vector<2x8x8xbf16>
    "tpu.trace_start"() <{level = 10 : i32, message = "bqk,bkd->bqd"}> : () -> ()
    %cst_23 = arith.constant dense<0.000000e+00> : vector<2x8x64xf32>
    %64 = tpu.matmul %63, %51, %cst_23 {dimension_numbers = #tpu.dot_dimension_numbers<[2], [1], [1], [2], [0, 0, 0, 1, 1, 2], [0], [0]>} : vector<2x8x8xbf16>, vector<2x8x64xbf16>, vector<2x8x64xf32> -> vector<2x8x64xf32>
    "tpu.trace_stop"() : () -> ()
    %65 = vector.shape_cast %64 : vector<2x8x64xf32> to vector<16x64xf32>
    %66 = arith.truncf %65 : vector<16x64xf32> to vector<16x64xbf16>
    %c0_24 = arith.constant 0 : index
    %c640 = arith.constant 640 : index
    %67 = vector.load %arg2[%c0_24, %c640] : memref<64x896xbf16, #tpu.memory_space<vmem>>, vector<64x64xbf16>
    %cst_25 = arith.constant dense<0.000000e+00> : vector<16x64xf32>
    %68 = tpu.matmul %66, %67, %cst_25 {dimension_numbers = #tpu.dot_dimension_numbers<[1], [0], [0], [1], [0, 0, 1, 1], [], []>} : vector<16x64xbf16>, vector<64x64xbf16>, vector<16x64xf32> -> vector<16x64xf32>
    %c0_26 = arith.constant 0 : index
    %c768 = arith.constant 768 : index
    %69 = vector.load %arg4[%c0_26, %c768] : memref<1x1280xf32, #tpu.memory_space<vmem>>, vector<1x64xf32>
    %70 = vector.broadcast %69 : vector<1x64xf32> to vector<16x64xf32>
    %71 = arith.addf %68, %70 : vector<16x64xf32>
    %72 = arith.addf %30, %71 : vector<16x64xf32>
    %cst_27 = arith.constant dense<0.000000e+00> : vector<16xf32>
    %73 = vector.multi_reduction <add>, %72, %cst_27 [1] : vector<16x64xf32> to vector<16xf32>
    %74 = vector.shape_cast %73 : vector<16xf32> to vector<16x1xf32>
    %cst_28 = arith.constant 6.400000e+01 : f32
    %75 = vector.broadcast %cst_28 : f32 to vector<16x1xf32>
    %76 = arith.divf %74, %75 : vector<16x1xf32>
    %77 = vector.broadcast %76 : vector<16x1xf32> to vector<16x64xf32>
    %78 = arith.subf %72, %77 : vector<16x64xf32>
    %79 = arith.mulf %78, %78 : vector<16x64xf32>
    %cst_29 = arith.constant dense<0.000000e+00> : vector<16xf32>
    %80 = vector.multi_reduction <add>, %79, %cst_29 [1] : vector<16x64xf32> to vector<16xf32>
    %81 = vector.shape_cast %80 : vector<16xf32> to vector<16x1xf32>
    %cst_30 = arith.constant 6.400000e+01 : f32
    %82 = vector.broadcast %cst_30 : f32 to vector<16x1xf32>
    %83 = arith.divf %81, %82 : vector<16x1xf32>
    %84 = vector.broadcast %76 : vector<16x1xf32> to vector<16x64xf32>
    %85 = arith.subf %72, %84 : vector<16x64xf32>
    %cst_31 = arith.constant 9.99999974E-6 : f32
    %86 = vector.broadcast %cst_31 : f32 to vector<16x1xf32>
    %87 = arith.addf %83, %86 : vector<16x1xf32>
    %88 = math.rsqrt %87 : vector<16x1xf32>
    %89 = vector.broadcast %88 : vector<16x1xf32> to vector<16x64xf32>
    %90 = arith.mulf %85, %89 : vector<16x64xf32>
    %c0_32 = arith.constant 0 : index
    %c896 = arith.constant 896 : index
    %91 = vector.load %arg4[%c0_32, %c896] : memref<1x1280xf32, #tpu.memory_space<vmem>>, vector<1x64xf32>
    %92 = vector.broadcast %91 : vector<1x64xf32> to vector<16x64xf32>
    %93 = arith.mulf %90, %92 : vector<16x64xf32>
    %c0_33 = arith.constant 0 : index
    %c1024 = arith.constant 1024 : index
    %94 = vector.load %arg4[%c0_33, %c1024] : memref<1x1280xf32, #tpu.memory_space<vmem>>, vector<1x64xf32>
    %95 = vector.broadcast %94 : vector<1x64xf32> to vector<16x64xf32>
    %96 = arith.addf %93, %95 : vector<16x64xf32>
    %97 = vector.shape_cast %96 : vector<16x64xf32> to vector<2x8x64xf32>
    %cst_34 = arith.constant dense<0.000000e+00> : vector<2x64xf32>
    %98 = vector.multi_reduction <add>, %97, %cst_34 [1] : vector<2x8x64xf32> to vector<2x64xf32>
    %cst_35 = arith.constant 8.000000e+00 : f32
    %99 = vector.broadcast %cst_35 : f32 to vector<2x64xf32>
    %100 = arith.divf %98, %99 : vector<2x64xf32>
    %101 = arith.truncf %100 : vector<2x64xf32> to vector<2x64xbf16>
    %c0_36 = arith.constant 0 : index
    %c768_37 = arith.constant 768 : index
    %102 = vector.load %arg2[%c0_36, %c768_37] : memref<64x896xbf16, #tpu.memory_space<vmem>>, vector<64x128xbf16>
    %cst_38 = arith.constant dense<0.000000e+00> : vector<2x128xf32>
    %103 = tpu.matmul %101, %102, %cst_38 {dimension_numbers = #tpu.dot_dimension_numbers<[1], [0], [0], [1], [0, 0, 1, 1], [], []>} : vector<2x64xbf16>, vector<64x128xbf16>, vector<2x128xf32> -> vector<2x128xf32>
    %c0_39 = arith.constant 0 : index
    %c1152 = arith.constant 1152 : index
    %104 = vector.load %arg4[%c0_39, %c1152] : memref<1x1280xf32, #tpu.memory_space<vmem>>, vector<1x128xf32>
    %105 = vector.broadcast %104 : vector<1x128xf32> to vector<2x128xf32>
    %106 = arith.addf %103, %105 : vector<2x128xf32>
    %107 = tpu.iota {dimensions = array<i32: 0>} : vector<2x128xi32>
    %108 = tpu.iota {dimensions = array<i32: 1>} : vector<2x128xi32>
    %c0_i32 = arith.constant 0 : i32
    %109 = vector.broadcast %c0_i32 : i32 to vector<2x128xi32>
    %110 = arith.cmpi eq, %107, %109 : vector<2x128xi32>
    %c2_i32 = arith.constant 2 : i32
    %111 = vector.broadcast %c2_i32 : i32 to vector<2x128xi32>
    %112 = arith.cmpi eq, %108, %111 : vector<2x128xi32>
    %113 = arith.andi %110, %112 : vector<2x128xi1>
    %114 = vector.broadcast %36 : f32 to vector<2x128xf32>
    %115 = arith.select %113, %114, %106 : vector<2x128xi1>, vector<2x128xf32>
    %116 = vector.shape_cast %115 : vector<2x128xf32> to vector<1x2x128xf32>
    %c0_40 = arith.constant 0 : index
    %c0_41 = arith.constant 0 : index
    %c0_42 = arith.constant 0 : index
    %117 = vector.load %arg5[%c0_40, %c0_41, %c0_42] : memref<1x2x128xf32, #tpu.memory_space<vmem>>, vector<1x2x128xf32>
    tpu.vector_store %arg5[%c0_40, %c0_41, %c0_42], %116 {strides = array<i32>} : memref<1x2x128xf32, #tpu.memory_space<vmem>>, vector<1x2x128xf32>,
    return
  }
  func.func @transform_0(%arg0: i32) -> (i32, i32, i32) {
    %c0_i32 = arith.constant 0 : i32
    %c0_i32_0 = arith.constant 0 : i32
    %c0_i32_1 = arith.constant 0 : i32
    return %arg0, %c0_i32, %c0_i32_0 : i32, i32, i32
  }
  func.func @transform_1(%arg0: i32) -> (i32, i32) {
    %c0_i32 = arith.constant 0 : i32
    %c0_i32_0 = arith.constant 0 : i32
    %c0_i32_1 = arith.constant 0 : i32
    return %c0_i32, %c0_i32_0 : i32, i32
  }
  func.func @transform_2(%arg0: i32) -> (i32, i32) {
    %c0_i32 = arith.constant 0 : i32
    %c0_i32_0 = arith.constant 0 : i32
    %c0_i32_1 = arith.constant 0 : i32
    return %c0_i32, %c0_i32_0 : i32, i32
  }
  func.func @transform_3(%arg0: i32) -> (i32, i32) {
    %c0_i32 = arith.constant 0 : i32
    %c0_i32_0 = arith.constant 0 : i32
    %c0_i32_1 = arith.constant 0 : i32
    return %c0_i32, %c0_i32_0 : i32, i32
  }
  func.func @transform_4(%arg0: i32) -> (i32, i32, i32) {
    %c0_i32 = arith.constant 0 : i32
    %c0_i32_0 = arith.constant 0 : i32
    %c0_i32_1 = arith.constant 0 : i32
    return %arg0, %c0_i32, %c0_i32_0 : i32, i32, i32
  }
}

</mosaic_0001>

<llo_original>
// kernel: tpu_custom_call.1
$region0: #{tpu_custom_call.1}
  #allocation0 [shape = 'u32[]', space=smem, size = 0x4, offset = 0x4, fixed_abs, tag = 'smem constant byte address 0x4 - core index']
  #allocation1 [shape = 'u32[144,128]{1,0:T(1,128)}', space=vmem, size = 0x12000, scoped, tag = 'internal scratch']
  %s0 = inlined_call_operand.vmem [shape: bf16[4,8,64], index: 0, kind: input, shape index: {}]
  %s1 = inlined_call_operand.hbm [shape: bf16[64,896], index: 1, kind: input, shape index: {}]
  %s2 = inlined_call_operand.vmem [shape: bf16[128,64], index: 2, kind: input, shape index: {}]
  %s3 = inlined_call_operand.vmem [shape: f32[1,1280], index: 3, kind: input, shape index: {}]
  %s4 = inlined_call_operand.hbm [shape: f32[2,2,128], index: 4, kind: output, shape index: {}]
  %s5 = sld [smem:[#allocation0]]
  $region53: #{tpu_custom_call.1} parent=0
    _
  %s7 = ssub.s32 1, %s5
  %s8 = scalar_select 0, %s7, %s5
  $region1: #{tpu_custom_call.1} parent=0
    #allocation2 [shape = 'u8[114688]{0}', space=vmem, size = 0x1c000, scoped, tag = 'input window, operand 1, single buffered']
    #allocation3 [shape = 's32[2]{0}', space=sflag, size = 0x8, scoped, tag = 'scoped memory for tpu_custom_call.1']
    #allocation4 [shape = 's32[2]{0}', space=sflag, size = 0x8, scoped, tag = 'scoped memory for tpu_custom_call.1']
    #allocation5 [shape = 'u8[2048]{0}', space=vmem, size = 0x800, scoped, tag = 'output window, operand 0']
    %9 = vsyncpa [#allocation3], 0
    %10 = vsyncpa [#allocation4], 0
    %s11 = scalar_lea.sflag [#allocation4], 1
    %12 = vsyncpa %s11, 0
    loop: start=0, step=1, limit=4
    $region2: #{tpu_custom_call.1} parent=1 // loop_pre_header
      _
    $region3: #{tpu_custom_call.1} parent=1 // loop_header
      %s14 = sphi 0, %s18
      %p15 = scmp.ge.s32.totalorder %s14, 4
      %s24 = sphi 0, %s26
      %s27 = sphi 0, %s24
      %s28 = sphi 0, %s27
      %s44 = sphi 0, %s28
      %s48 = sphi 0, %s48
      %s50 = sphi 0, %s48
      %s51 = sphi 0, %s50
      %s65 = sphi 0, %s51
      %s69 = sphi 0, %s69
      %s71 = sphi 0, %s69
      %s72 = sphi 0, %s71
      %s86 = sphi 0, %s72
      %s90 = sphi 0, %s90
      %s92 = sphi 0, %s90
      %s93 = sphi 0, %s92
      %s107 = sphi 0, %s93
      %s113 = sphi 0, %s115
      %s116 = sphi 0, %s113
      %s117 = sphi 0, %s116
      %s133 = sphi 0, %s117
    $region4: #{tpu_custom_call.1} parent=1 // loop_header_branch
      %17 = sbr.rel (%p15) target = $region8
    $region5: #{tpu_custom_call.1} parent=1 // loop_body
      %s19 = ssub.s32 %s14, 1
      %s20 = ssub.s32 %s14, 2
      %s21 = sadd.s32 %s14, 1
      %s22 = ssub.s32 %s14, %s21
      %p23 = scmp.eq.s32.totalorder %s22, 0
      %s25 = sadd.s32 %s24, 1
      %s26 = scalar_select %p23, %s24, %s25
      %p29 = pneg %p23
      %p30 = scmp.eq.s32.totalorder %s14, 1
      %p31 = por %p29, %p30
      %p32 = scmp.ne.s32.totalorder %s24, %s27
      %p33 = scmp.eq.s32.totalorder %s14, 0
      %p34 = por %p32, %p33
      %p35 = scmp.ne.s32.totalorder %s24, %s27
      %p36 = scmp.eq.s32.totalorder %s19, 1
      %p37 = por %p35, %p36
      %p38 = scmp.ne.s32.totalorder %s27, %s28
      %p39 = scmp.eq.s32.totalorder %s19, 0
      %p40 = por %p38, %p39
      %p41 = scmp.ne.s32.totalorder %s27, %s28
      %p42 = scmp.eq.s32.totalorder %s20, 1
      %p43 = por %p41, %p42
      %p45 = scmp.ne.s32.totalorder %s28, %s44
      %p46 = scmp.eq.s32.totalorder %s20, 0
      %p47 = por %p45, %p46
      %s49 = sadd.s32 %s48, 1
      %p52 = scmp.eq.s32.totalorder %s14, 1
      %p53 = scmp.ne.s32.totalorder %s48, %s50
      %p54 = scmp.eq.s32.totalorder %s14, 0
      %p55 = por %p53, %p54
      %p56 = scmp.ne.s32.totalorder %s48, %s50
      %p57 = scmp.eq.s32.totalorder %s19, 1
      %p58 = por %p56, %p57
      %p59 = scmp.ne.s32.totalorder %s50, %s51
      %p60 = scmp.eq.s32.totalorder %s19, 0
      %p61 = por %p59, %p60
      %p62 = scmp.ne.s32.totalorder %s50, %s51
      %p63 = scmp.eq.s32.totalorder %s20, 1
      %p64 = por %p62, %p63
      %p66 = scmp.ne.s32.totalorder %s51, %s65
      %p67 = scmp.eq.s32.totalorder %s20, 0
      %p68 = por %p66, %p67
      %s70 = sadd.s32 %s69, 1
      %p73 = scmp.eq.s32.totalorder %s14, 1
      %p74 = scmp.ne.s32.totalorder %s69, %s71
      %p75 = scmp.eq.s32.totalorder %s14, 0
      %p76 = por %p74, %p75
      %p77 = scmp.ne.s32.totalorder %s69, %s71
      %p78 = scmp.eq.s32.totalorder %s19, 1
      %p79 = por %p77, %p78
      %p80 = scmp.ne.s32.totalorder %s71, %s72
      %p81 = scmp.eq.s32.totalorder %s19, 0
      %p82 = por %p80, %p81
      %p83 = scmp.ne.s32.totalorder %s71, %s72
      %p84 = scmp.eq.s32.totalorder %s20, 1
      %p85 = por %p83, %p84
      %p87 = scmp.ne.s32.totalorder %s72, %s86
      %p88 = scmp.eq.s32.totalorder %s20, 0
      %p89 = por %p87, %p88
      %s91 = sadd.s32 %s90, 1
      %p94 = scmp.eq.s32.totalorder %s14, 1
      %p95 = scmp.ne.s32.totalorder %s90, %s92
      %p96 = scmp.eq.s32.totalorder %s14, 0
      %p97 = por %p95, %p96
      %p98 = scmp.ne.s32.totalorder %s90, %s92
      %p99 = scmp.eq.s32.totalorder %s19, 1
      %p100 = por %p98, %p99
      %p101 = scmp.ne.s32.totalorder %s92, %s93
      %p102 = scmp.eq.s32.totalorder %s19, 0
      %p103 = por %p101, %p102
      %p104 = scmp.ne.s32.totalorder %s92, %s93
      %p105 = scmp.eq.s32.totalorder %s20, 1
      %p106 = por %p104, %p105
      %p108 = scmp.ne.s32.totalorder %s93, %s107
      %p109 = scmp.eq.s32.totalorder %s20, 0
      %p110 = por %p108, %p109
      %s111 = ssub.s32 %s14, %s21
      %p112 = scmp.eq.s32.totalorder %s111, 0
      %s114 = sadd.s32 %s113, 1
      %s115 = scalar_select %p112, %s113, %s114
      %p118 = pneg %p112
      %p119 = scmp.eq.s32.totalorder %s14, 1
      %p120 = por %p118, %p119
      %p121 = scmp.ne.s32.totalorder %s113, %s116
      %p122 = scmp.eq.s32.totalorder %s14, 0
      %p123 = por %p121, %p122
      %p124 = scmp.ne.s32.totalorder %s113, %s116
      %p125 = scmp.eq.s32.totalorder %s19, 1
      %p126 = por %p124, %p125
      %p127 = scmp.ne.s32.totalorder %s116, %s117
      %p128 = scmp.eq.s32.totalorder %s19, 0
      %p129 = por %p127, %p128
      %p130 = scmp.ne.s32.totalorder %s116, %s117
      %p131 = scmp.eq.s32.totalorder %s20, 1
      %p132 = por %p130, %p131
      %p134 = scmp.ne.s32.totalorder %s117, %s133
      %p135 = scmp.eq.s32.totalorder %s20, 0
      %p136 = por %p134, %p135
      %p137 = scmp.le.s32.totalorder 1, %s14
      %p138 = scmp.lt.s32.totalorder %s14, 3
      %p139 = pnand %p137, %p138
      %p140 = pneg %p139
      // Predicated region
      $region9: #{tpu_custom_call.1} parent=5 // pred_check
        _
      $region10: #{tpu_custom_call.1} parent=5 // pred_check_branch
        %142 = sbr.rel (%p139) target = $region12
      $region11: #{tpu_custom_call.1} parent=5 // pred_region
        %s143 = ssub.s32 %s14, 1
        // Predicated region
        $region13: #{tpu_custom_call.1} parent=11 // pred_check
          %p144 = pneg %p61
        $region14: #{tpu_custom_call.1} parent=11 // pred_check_branch
          %146 = sbr.rel (%p144) target = $region16
        $region15: #{tpu_custom_call.1} parent=11 // pred_region
          %s148 = ssub.s32 3584, 3584
          %149 = vsyncadd [#allocation3], %s148
          %s150 = sshll.u32 [#allocation2], 4
          %s151 = int_to_ptr.vmem [resolvable:$true] %s150
          %156 = dma.hbm_to_vmem [thread:$0]  %s1, 3584, %s151, [#allocation3], 448, 448, 28
        $region16: #{tpu_custom_call.1} parent=11 // pred_fallthru
          _
        // Predicated region
        $region17: #{tpu_custom_call.1} parent=11 // pred_check
          %p157 = pneg %p82
        $region18: #{tpu_custom_call.1} parent=11 // pred_check_branch
          %159 = sbr.rel (%p157) target = $region20
        $region19: #{tpu_custom_call.1} parent=11 // pred_region
          _
        $region20: #{tpu_custom_call.1} parent=11 // pred_fallthru
          _
        // Predicated region
        $region21: #{tpu_custom_call.1} parent=11 // pred_check
          %p160 = pneg %p103
        $region22: #{tpu_custom_call.1} parent=11 // pred_check_branch
          %162 = sbr.rel (%p160) target = $region24
        $region23: #{tpu_custom_call.1} parent=11 // pred_region
          _
        $region24: #{tpu_custom_call.1} parent=11 // pred_fallthru
          _
      $region12: #{tpu_custom_call.1} parent=5 // pred_fallthru
        _
      %p163 = scmp.lt.s32.totalorder %s14, 2
      // Predicated region
      $region25: #{tpu_custom_call.1} parent=5 // pred_check
        %p164 = pneg %p163
      $region26: #{tpu_custom_call.1} parent=5 // pred_check_branch
        %166 = sbr.rel (%p164) target = $region28
      $region27: #{tpu_custom_call.1} parent=5 // pred_region
        // Predicated region
        $region29: #{tpu_custom_call.1} parent=27 // pred_check
          %p167 = pneg %p34
        $region30: #{tpu_custom_call.1} parent=27 // pred_check_branch
          %169 = sbr.rel (%p167) target = $region32
        $region31: #{tpu_custom_call.1} parent=27 // pred_region
          %s170 = smul.u32 2, %s14
          %p171 = scmp.lt.s32.totalorder %s170, 3
          %s172 = scalar_select %p171, %s170, 3
          %s173 = smul.addr %s172, 4
          %s174 = scalar_lea.vmem %s0, %s173
          %s175 = smul.u32 2, %s14
        $region32: #{tpu_custom_call.1} parent=27 // pred_fallthru
          _
      $region28: #{tpu_custom_call.1} parent=5 // pred_fallthru
        _
      %p176 = scmp.le.s32.totalorder 1, %s14
      %p177 = scmp.lt.s32.totalorder %s14, 3
      %p178 = pnand %p176, %p177
      %p179 = pneg %p178
      // Predicated region
      $region33: #{tpu_custom_call.1} parent=5 // pred_check
        _
      $region34: #{tpu_custom_call.1} parent=5 // pred_check_branch
        %181 = sbr.rel (%p178) target = $region36
      $region35: #{tpu_custom_call.1} parent=5 // pred_region
        %s182 = ssub.s32 %s14, 1
        // Predicated region
        $region37: #{tpu_custom_call.1} parent=35 // pred_check
          %p183 = pneg %p61
        $region38: #{tpu_custom_call.1} parent=35 // pred_check_branch
          %185 = sbr.rel (%p183) target = $region40
        $region39: #{tpu_custom_call.1} parent=35 // pred_region
          %186 = dma.done [#allocation3], 3584
        $region40: #{tpu_custom_call.1} parent=35 // pred_fallthru
          _
        %s187 = smul.u32 2, %s19
        %p188 = scmp.lt.s32.totalorder %s187, 3
        %s189 = scalar_select %p188, %s187, 3
        %s190 = smul.addr %s189, 4
        %s191 = scalar_lea.vmem %s0, %s190
        %p192 = pneg %p40
        %p193 = pneg %p37
        %p194 = pneg %p61
        %p195 = pneg %p58
        %p196 = pneg %p82
        %p197 = pneg %p79
        %p198 = pneg %p103
        %p199 = pneg %p100
        %p200 = pneg %p129
        %p201 = pneg %p126
        %s202 = sand.u32 %s116, 1
        %s203 = scalar_lea.sflag [#allocation4], %s202
        %s204 = sand.u32 %s116, 1
        %s205 = smul.addr %s204, 2
        %s206 = scalar_lea.vmem [#allocation5], %s205
        %s207 = smul.u32 2, %s19
        %p208 = scmp.lt.s32.totalorder %s207, 3
        %s209 = scalar_select %p208, %s207, 3
        %s210 = smul.addr %s209, 4
        %s211 = scalar_lea.vmem %s0, %s210
        %s212 = smul.u32 2, %s19
        %v214 = vld [vmem:[%s211] sm:$0xf]
        %v215 = vld [vmem:[%s211 + $0x4] sm:$0xf]
        %v216 = vld [vmem:[#allocation2] sm:$0xff]
        %v217 = vld [vmem:[#allocation2 + $0x1c] sm:$0xff]
        %v218 = vld [vmem:[#allocation2 + $0x38] sm:$0xff]
        %v219 = vld [vmem:[#allocation2 + $0x54] sm:$0xff]
        %v220 = vld [vmem:[#allocation2 + $0x70] sm:$0xff]
        %v221 = vld [vmem:[#allocation2 + $0x8c] sm:$0xff]
        %v222 = vld [vmem:[#allocation2 + $0xa8] sm:$0xff]
        %v223 = vld [vmem:[#allocation2 + $0xc4] sm:$0xff]
        %v224 = vld [vmem:[%s3] sm:$0x3]
        %v226 = vlaneseq
        %v227 = vshrl.u32 %v226, 7
        %v228 = vsub.s32 0, %v227
        %v229 = vrot.slane %v224, %v228
        %v230 = vlaneseq
        %v231 = vshrl.u32 %v230, 7
        %v232 = vsub.s32 1, %v231
        %v233 = vrot.slane %v224, %v232
        %v238 = vunpack.c.l.b16 %v214
        %v239 = vunpack.c.l.b16 %v215
        %v240 = vpack.c.b16 %v239, %v238
        %v249 = vunpack.c.l.b16 %v216
        %v250 = vunpack.c.h.b16 %v216
        %v251 = vunpack.c.l.b16 %v217
        %v252 = vunpack.c.h.b16 %v217
        %v253 = vunpack.c.l.b16 %v218
        %v254 = vunpack.c.h.b16 %v218
        %v255 = vunpack.c.l.b16 %v219
        %v256 = vunpack.c.h.b16 %v219
        %v257 = vunpack.c.l.b16 %v220
        %v258 = vunpack.c.h.b16 %v220
        %v259 = vunpack.c.l.b16 %v221
        %v260 = vunpack.c.h.b16 %v221
        %v261 = vunpack.c.l.b16 %v222
        %v262 = vunpack.c.h.b16 %v222
        %v263 = vunpack.c.l.b16 %v223
        %v264 = vunpack.c.h.b16 %v223
        %v265 = vpack.c.b16 %v251, %v249
        %v266 = vpack.c.b16 %v252, %v250
        %v267 = vpack.c.b16 %v255, %v253
        %v268 = vpack.c.b16 %v256, %v254
        %v269 = vpack.c.b16 %v259, %v257
        %v270 = vpack.c.b16 %v260, %v258
        %v271 = vpack.c.b16 %v263, %v261
        %v272 = vpack.c.b16 %v264, %v262
        %vm281 = vcmask 523264
        %v283 = vsel %vm281, %v240, 0
        %285 = vmatprep.subr.bf16.mxu0 %v266
        %286 = vmatpush1.bf16.msra.mxu0 %v265
        %287 = vmatprep.subr.bf16.mxu0 %v268
        %288 = vmatpush1.bf16.msra.mxu0 %v267
        %289 = vmatprep.subr.bf16.mxu0 %v270
        %290 = vmatpush1.bf16.msra.mxu0 %v269
        %291 = vmatprep.subr.bf16.mxu0 %v272
        %292 = vmatpush1.bf16.msra.mxu0 %v271
        %293 = vmatprep.subr.bf16.mxu0 0
        %294 = vmatpush1.bf16.msra.mxu0 0
        %295 = vmatprep.subr.bf16.mxu0 0
        %296 = vmatpush1.bf16.msra.mxu0 0
        %297 = vmatprep.subr.bf16.mxu0 0
        %298 = vmatpush1.bf16.msra.mxu0 0
        %299 = vmatprep.subr.bf16.mxu0 0
        %300 = vmatpush1.bf16.msra.mxu0 0
        %301 = vmatprep.subr.bf16.mxu0 0
        %302 = vmatpush1.bf16.msra.mxu0 0
        %303 = vmatprep.subr.bf16.mxu0 0
        %304 = vmatpush1.bf16.msra.mxu0 0
        %305 = vmatprep.subr.bf16.mxu0 0
        %306 = vmatpush1.bf16.msra.mxu0 0
        %307 = vmatprep.subr.bf16.mxu0 0
        %308 = vmatpush1.bf16.msra.mxu0 0
        %309 = vmatprep.subr.bf16.mxu0 0
        %310 = vmatpush1.bf16.msra.mxu0 0
        %311 = vmatprep.subr.bf16.mxu0 0
        %312 = vmatpush1.bf16.msra.mxu0 0
        %313 = vmatprep.subr.bf16.mxu0 0
        %314 = vmatpush1.bf16.msra.mxu0 0
        %315 = vmatprep.subr.bf16.mxu0 0
        %316 = vmatpush1.bf16.msra.mxu0 0
        %317 = vmatprep.mubr.bf16.mxu0 0
        %318 = vmatmul.mubr.bf16.gmra.mrb[0].mxu0 %v283
        %v319 = vpop.f32.mrb[0].mxu0
        %v320 = vadd.f32 %v229, %v319
        %v321 = vpop.f32.mrb[0].mxu0
        %v322 = vadd.f32 %v233, %v321
        %v323 = vpop.f32.mrb[0].mxu0
        %v324 = vadd.f32 %v229, %v323
        %v325 = vpop.f32.mrb[0].mxu0
        %v326 = vadd.f32 %v233, %v325
        %327 = vdwg.mxu0
        %v328 = vpack.c.bf16 %v324, %v320
        %v329 = vpack.c.bf16 %v326, %v322
        %v330 = vld [vmem:[#allocation2 + $0x8] sm:$0xf]
        %v331 = vld [vmem:[#allocation2 + $0x24] sm:$0xf]
        %v332 = vld [vmem:[#allocation2 + $0x40] sm:$0xf]
        %v333 = vld [vmem:[#allocation2 + $0x5c] sm:$0xf]
        %v334 = vld [vmem:[#allocation2 + $0x78] sm:$0xf]
        %v335 = vld [vmem:[#allocation2 + $0x94] sm:$0xf]
        %v336 = vld [vmem:[#allocation2 + $0xb0] sm:$0xf]
        %v337 = vld [vmem:[#allocation2 + $0xcc] sm:$0xf]
        %v338 = vld [vmem:[%s3 + $0x2] sm:$0x1]
        %v340 = vlaneseq
        %v341 = vshrl.u32 %v340, 7
        %v342 = vsub.s32 0, %v341
        %v343 = vrot.slane %v338, %v342
        %v353 = vunpack.c.l.b16 %v330
        %v354 = vunpack.c.l.b16 %v331
        %v355 = vunpack.c.l.b16 %v332
        %v356 = vunpack.c.l.b16 %v333
        %v357 = vunpack.c.l.b16 %v334
        %v358 = vunpack.c.l.b16 %v335
        %v359 = vunpack.c.l.b16 %v336
        %v360 = vunpack.c.l.b16 %v337
        %v361 = vpack.c.b16 %v354, %v353
        %v362 = vpack.c.b16 %v356, %v355
        %v363 = vpack.c.b16 %v358, %v357
        %v364 = vpack.c.b16 %v360, %v359
        %v370 = vsel %vm281, %v328, 0
        %v373 = vsel %vm281, %v329, 0
        %375 = vmatprep.subr.bf16.mxu0 0
        %376 = vmatpush1.bf16.msra.mxu0 %v361
        %377 = vmatprep.subr.bf16.mxu0 0
        %378 = vmatpush1.bf16.msra.mxu0 %v362
        %379 = vmatprep.subr.bf16.mxu0 0
        %380 = vmatpush1.bf16.msra.mxu0 %v363
        %381 = vmatprep.subr.bf16.mxu0 0
        %382 = vmatpush1.bf16.msra.mxu0 %v364
        %383 = vmatprep.subr.bf16.mxu0 0
        %384 = vmatpush1.bf16.msra.mxu0 0
        %385 = vmatprep.subr.bf16.mxu0 0
        %386 = vmatpush1.bf16.msra.mxu0 0
        %387 = vmatprep.subr.bf16.mxu0 0
        %388 = vmatpush1.bf16.msra.mxu0 0
        %389 = vmatprep.subr.bf16.mxu0 0
        %390 = vmatpush1.bf16.msra.mxu0 0
        %391 = vmatprep.subr.bf16.mxu0 0
        %392 = vmatpush1.bf16.msra.mxu0 0
        %393 = vmatprep.subr.bf16.mxu0 0
        %394 = vmatpush1.bf16.msra.mxu0 0
        %395 = vmatprep.subr.bf16.mxu0 0
        %396 = vmatpush1.bf16.msra.mxu0 0
        %397 = vmatprep.subr.bf16.mxu0 0
        %398 = vmatpush1.bf16.msra.mxu0 0
        %399 = vmatprep.subr.bf16.mxu0 0
        %400 = vmatpush1.bf16.msra.mxu0 0
        %401 = vmatprep.subr.bf16.mxu0 0
        %402 = vmatpush1.bf16.msra.mxu0 0
        %403 = vmatprep.subr.bf16.mxu0 0
        %404 = vmatpush1.bf16.msra.mxu0 0
        %405 = vmatprep.subr.bf16.mxu0 0
        %406 = vmatpush1.bf16.msra.mxu0 0
        %407 = vmatprep.mubr.bf16.mxu0 0
        %408 = vmatmul.mubr.bf16.gmra.mrb[0].mxu0 %v370
        %v409 = vpop.f32.mrb[0].mxu0
        %v410 = vadd.f32 %v343, %v409
        %v411 = vpop.f32.mrb[0].mxu0
        %v412 = vpop.f32.mrb[0].mxu0
        %v413 = vadd.f32 %v343, %v412
        %v414 = vpop.f32.mrb[0].mxu0
        %415 = vmatprep.mubr.bf16.mxu0 0
        %416 = vmatmul.mubr.bf16.gmra.mrb[0].mxu0 %v373
        %v417 = vpop.f32.mrb[0].mxu0
        %v418 = vadd.f32 %v343, %v417
        %v419 = vpop.f32.mrb[0].mxu0
        %v420 = vpop.f32.mrb[0].mxu0
        %v421 = vadd.f32 %v343, %v420
        %v422 = vpop.f32.mrb[0].mxu0
        %423 = vdwg.mxu0
        %v424 = vxor.u32 %v410, 2147483648
        %v425 = vxor.u32 %v413, 2147483648
        %v426 = vxor.u32 %v418, 2147483648
        %v427 = vxor.u32 %v421, 2147483648
        %v428 = vmul.f32 %v424, 1.442695
        %v429 = vpow.pop %v428
        %v430 = vmul.f32 %v425, 1.442695
        %v431 = vpow.pop %v430
        %v432 = vmul.f32 %v426, 1.442695
        %v433 = vpow.pop %v432
        %v434 = vmul.f32 %v427, 1.442695
        %v435 = vpow.pop %v434
        %v436 = vadd.f32 %v429, 1.0
        %v437 = vadd.f32 %v431, 1.0
        %v438 = vadd.f32 %v433, 1.0
        %v439 = vadd.f32 %v435, 1.0
        %v440 = vrcp.pop %v436
        %v441 = vmul.f32 1.0, %v440
        %v442 = vrcp.pop %v437
        %v443 = vmul.f32 1.0, %v442
        %v444 = vrcp.pop %v438
        %v445 = vmul.f32 1.0, %v444
        %v446 = vrcp.pop %v439
        %v447 = vmul.f32 1.0, %v446
        %v448 = vmul.f32 %v410, %v441
        %v449 = vmul.f32 %v413, %v443
        %v450 = vmul.f32 %v418, %v445
        %v451 = vmul.f32 %v421, %v447
        %v452 = vpack.c.bf16 %v449, %v448
        %v453 = vpack.c.bf16 %v451, %v450
        %v454 = vld [vmem:[%s2] sm:$0xf]
        %v455 = vld [vmem:[%s2 + $0x4] sm:$0xf]
        %v456 = vld [vmem:[%s2 + $0x8] sm:$0xf]
        %v457 = vld [vmem:[%s2 + $0xc] sm:$0xf]
        %v458 = vld [vmem:[%s2 + $0x10] sm:$0xf]
        %v459 = vld [vmem:[%s2 + $0x14] sm:$0xf]
        %v460 = vld [vmem:[%s2 + $0x18] sm:$0xf]
        %v461 = vld [vmem:[%s2 + $0x1c] sm:$0xf]
        %v462 = vld [vmem:[%s2 + $0x20] sm:$0xf]
        %v463 = vld [vmem:[%s2 + $0x24] sm:$0xf]
        %v464 = vld [vmem:[%s2 + $0x28] sm:$0xf]
        %v465 = vld [vmem:[%s2 + $0x2c] sm:$0xf]
        %v466 = vld [vmem:[%s2 + $0x30] sm:$0xf]
        %v467 = vld [vmem:[%s2 + $0x34] sm:$0xf]
        %v468 = vld [vmem:[%s2 + $0x38] sm:$0xf]
        %v469 = vld [vmem:[%s2 + $0x3c] sm:$0xf]
        %v470 = vld [vmem:[%s3 + $0x3] sm:$0x1]
        %v472 = vlaneseq
        %v473 = vshrl.u32 %v472, 7
        %v474 = vsub.s32 0, %v473
        %v475 = vrot.slane %v470, %v474
        %v493 = vunpack.c.l.b16 %v454
        %v494 = vunpack.c.l.b16 %v455
        %v495 = vunpack.c.l.b16 %v456
        %v496 = vunpack.c.l.b16 %v457
        %v497 = vunpack.c.l.b16 %v458
        %v498 = vunpack.c.l.b16 %v459
        %v499 = vunpack.c.l.b16 %v460
        %v500 = vunpack.c.l.b16 %v461
        %v501 = vunpack.c.l.b16 %v462
        %v502 = vunpack.c.l.b16 %v463
        %v503 = vunpack.c.l.b16 %v464
        %v504 = vunpack.c.l.b16 %v465
        %v505 = vunpack.c.l.b16 %v466
        %v506 = vunpack.c.l.b16 %v467
        %v507 = vunpack.c.l.b16 %v468
        %v508 = vunpack.c.l.b16 %v469
        %v509 = vpack.c.b16 %v494, %v493
        %v510 = vpack.c.b16 %v496, %v495
        %v511 = vpack.c.b16 %v498, %v497
        %v512 = vpack.c.b16 %v500, %v499
        %v513 = vpack.c.b16 %v502, %v501
        %v514 = vpack.c.b16 %v504, %v503
        %v515 = vpack.c.b16 %v506, %v505
        %v516 = vpack.c.b16 %v508, %v507
        %525 = vmatprep.subr.bf16.mxu0 0
        %526 = vmatpush1.bf16.msra.mxu0 %v509
        %527 = vmatprep.subr.bf16.mxu0 0
        %528 = vmatpush1.bf16.msra.mxu0 %v510
        %529 = vmatprep.subr.bf16.mxu0 0
        %530 = vmatpush1.bf16.msra.mxu0 %v511
        %531 = vmatprep.subr.bf16.mxu0 0
        %532 = vmatpush1.bf16.msra.mxu0 %v512
        %533 = vmatprep.subr.bf16.mxu0 0
        %534 = vmatpush1.bf16.msra.mxu0 %v513
        %535 = vmatprep.subr.bf16.mxu0 0
        %536 = vmatpush1.bf16.msra.mxu0 %v514
        %537 = vmatprep.subr.bf16.mxu0 0
        %538 = vmatpush1.bf16.msra.mxu0 %v515
        %539 = vmatprep.subr.bf16.mxu0 0
        %540 = vmatpush1.bf16.msra.mxu0 %v516
        %541 = vmatprep.subr.bf16.mxu0 0
        %542 = vmatpush1.bf16.msra.mxu0 0
        %543 = vmatprep.subr.bf16.mxu0 0
        %544 = vmatpush1.bf16.msra.mxu0 0
        %545 = vmatprep.subr.bf16.mxu0 0
        %546 = vmatpush1.bf16.msra.mxu0 0
        %547 = vmatprep.subr.bf16.mxu0 0
        %548 = vmatpush1.bf16.msra.mxu0 0
        %549 = vmatprep.subr.bf16.mxu0 0
        %550 = vmatpush1.bf16.msra.mxu0 0
        %551 = vmatprep.subr.bf16.mxu0 0
        %552 = vmatpush1.bf16.msra.mxu0 0
        %553 = vmatprep.subr.bf16.mxu0 0
        %554 = vmatpush1.bf16.msra.mxu0 0
        %555 = vmatprep.subr.bf16.mxu0 0
        %556 = vmatpush1.bf16.msra.mxu0 0
        %557 = vmatprep.mubr.bf16.mxu0 0
        %558 = vmatmul.mubr.bf16.gmra.mrb[0].mxu0 %v452
        %v559 = vpop.f32.mrb[0].mxu0
        %v560 = vadd.f32 %v475, %v559
        %v561 = vpop.f32.mrb[0].mxu0
        %v562 = vpop.f32.mrb[0].mxu0
        %v563 = vadd.f32 %v475, %v562
        %v564 = vpop.f32.mrb[0].mxu0
        %565 = vmatprep.mubr.bf16.mxu0 0
        %566 = vmatmul.mubr.bf16.gmra.mrb[0].mxu0 %v453
        %v567 = vpop.f32.mrb[0].mxu0
        %v568 = vadd.f32 %v475, %v567
        %v569 = vpop.f32.mrb[0].mxu0
        %v570 = vpop.f32.mrb[0].mxu0
        %v571 = vadd.f32 %v475, %v570
        %v572 = vpop.f32.mrb[0].mxu0
        %573 = vdwg.mxu0
        %576 = vrot.lane.b32.xlu0 %v320, 64
        %v577 = vpop.permute.xlu0 %576
        %578 = vrot.lane.b32.xlu0 %v324, 64
        %v579 = vpop.permute.xlu0 %578
        %v582 = vsub.f32 %v560, %v577
        %v583 = vsub.f32 %v563, %v579
        %v584 = vmul.f32 %v582, %v582
        %v585 = vmul.f32 %v583, %v583
        %v586 = vsel %vm281, %v584, 0.0
        %v587 = vsel %vm281, %v585, 0.0
        %v588 = vadd.f32 %v586, %v587
        %589 = vadd.xlane.f32.xlu0 %v588
        %v590 = vpop.xlane.xlu0 %589
        %v591 = vrot.slane %v590, 4
        %v592 = vadd.f32 %v590, %v591
        %v593 = vrot.slane %v592, 2
        %v594 = vadd.f32 %v592, %v593
        %v595 = vrot.slane %v594, 1
        %v596 = vadd.f32 %v594, %v595
        %s597 = vtos %v596
        %v598 = vpack.c.bf16 %v571, %v568
        %v599 = vld [vmem:[#allocation2 + $0xc] sm:$0xff]
        %v600 = vld [vmem:[#allocation2 + $0x28] sm:$0xff]
        %v601 = vld [vmem:[#allocation2 + $0x44] sm:$0xff]
        %v602 = vld [vmem:[#allocation2 + $0x60] sm:$0xff]
        %v603 = vld [vmem:[#allocation2 + $0x7c] sm:$0xff]
        %v604 = vld [vmem:[#allocation2 + $0x98] sm:$0xff]
        %v605 = vld [vmem:[#allocation2 + $0xb4] sm:$0xff]
        %v606 = vld [vmem:[#allocation2 + $0xd0] sm:$0xff]
        %v607 = vld [vmem:[%s3 + $0x4] sm:$0x3]
        %v609 = vlaneseq
        %v610 = vshrl.u32 %v609, 7
        %v611 = vsub.s32 0, %v610
        %v612 = vrot.slane %v607, %v611
        %v613 = vlaneseq
        %v614 = vshrl.u32 %v613, 7
        %v615 = vsub.s32 1, %v614
        %v616 = vrot.slane %v607, %v615
        %v627 = vunpack.c.l.b16 %v599
        %v628 = vunpack.c.h.b16 %v599
        %v629 = vunpack.c.l.b16 %v600
        %v630 = vunpack.c.h.b16 %v600
        %v631 = vunpack.c.l.b16 %v601
        %v632 = vunpack.c.h.b16 %v601
        %v633 = vunpack.c.l.b16 %v602
        %v634 = vunpack.c.h.b16 %v602
        %v635 = vunpack.c.l.b16 %v603
        %v636 = vunpack.c.h.b16 %v603
        %v637 = vunpack.c.l.b16 %v604
        %v638 = vunpack.c.h.b16 %v604
        %v639 = vunpack.c.l.b16 %v605
        %v640 = vunpack.c.h.b16 %v605
        %v641 = vunpack.c.l.b16 %v606
        %v642 = vunpack.c.h.b16 %v606
        %v643 = vpack.c.b16 %v629, %v627
        %v644 = vpack.c.b16 %v630, %v628
        %v645 = vpack.c.b16 %v633, %v631
        %v646 = vpack.c.b16 %v634, %v632
        %v647 = vpack.c.b16 %v637, %v635
        %v648 = vpack.c.b16 %v638, %v636
        %v649 = vpack.c.b16 %v641, %v639
        %v650 = vpack.c.b16 %v642, %v640
        %v660 = vsel %vm281, %v598, 0
        %662 = vmatprep.subr.bf16.mxu0 %v644
        %663 = vmatpush1.bf16.msra.mxu0 %v643
        %664 = vmatprep.subr.bf16.mxu0 %v646
        %665 = vmatpush1.bf16.msra.mxu0 %v645
        %666 = vmatprep.subr.bf16.mxu0 %v648
        %667 = vmatpush1.bf16.msra.mxu0 %v647
        %668 = vmatprep.subr.bf16.mxu0 %v650
        %669 = vmatpush1.bf16.msra.mxu0 %v649
        %670 = vmatprep.subr.bf16.mxu0 0
        %671 = vmatpush1.bf16.msra.mxu0 0
        %672 = vmatprep.subr.bf16.mxu0 0
        %673 = vmatpush1.bf16.msra.mxu0 0
        %674 = vmatprep.subr.bf16.mxu0 0
        %675 = vmatpush1.bf16.msra.mxu0 0
        %676 = vmatprep.subr.bf16.mxu0 0
        %677 = vmatpush1.bf16.msra.mxu0 0
        %678 = vmatprep.subr.bf16.mxu0 0
        %679 = vmatpush1.bf16.msra.mxu0 0
        %680 = vmatprep.subr.bf16.mxu0 0
        %681 = vmatpush1.bf16.msra.mxu0 0
        %682 = vmatprep.subr.bf16.mxu0 0
        %683 = vmatpush1.bf16.msra.mxu0 0
        %684 = vmatprep.subr.bf16.mxu0 0
        %685 = vmatpush1.bf16.msra.mxu0 0
        %686 = vmatprep.subr.bf16.mxu0 0
        %687 = vmatpush1.bf16.msra.mxu0 0
        %688 = vmatprep.subr.bf16.mxu0 0
        %689 = vmatpush1.bf16.msra.mxu0 0
        %690 = vmatprep.subr.bf16.mxu0 0
        %691 = vmatpush1.bf16.msra.mxu0 0
        %692 = vmatprep.subr.bf16.mxu0 0
        %693 = vmatpush1.bf16.msra.mxu0 0
        %694 = vmatprep.mubr.bf16.mxu0 0
        %695 = vmatmul.mubr.bf16.gmra.mrb[0].mxu0 %v660
        %v696 = vpop.f32.mrb[0].mxu0
        %v697 = vadd.f32 %v612, %v696
        %v698 = vpop.f32.mrb[0].mxu0
        %v699 = vadd.f32 %v616, %v698
        %v700 = vpop.f32.mrb[0].mxu0
        %v701 = vadd.f32 %v612, %v700
        %v702 = vpop.f32.mrb[0].mxu0
        %v703 = vadd.f32 %v616, %v702
        %704 = vdwg.mxu0
        %v705 = vpack.c.bf16 %v697, %v697
        %v706 = vpack.c.bf16 %v701, %v701
        %v707 = vpack.c.bf16 %v699, %v699
        %v708 = vpack.c.bf16 %v703, %v703
        %710 = vrot.lane.b32.xlu0 %v705, 64
        %v711 = vpop.permute.xlu0 %710
        %v713 = vsel %vm281, %v705, 0
        %v716 = vsel %vm281, %v711, 0
        %718 = vmatprep.subr.bf16.mxu0 0
        %719 = vmatpush1.bf16.xpose.msra.mxu0 %v716
        %720 = vmatprep.subr.bf16.mxu0 0
        %721 = vmatpush1.bf16.xpose.msra.mxu0 0
        %722 = vmatprep.subr.bf16.mxu0 0
        %723 = vmatpush1.bf16.xpose.msra.mxu0 0
        %724 = vmatprep.subr.bf16.mxu0 0
        %725 = vmatpush1.bf16.xpose.msra.mxu0 0
        %726 = vmatprep.subr.bf16.mxu0 0
        %727 = vmatpush1.bf16.xpose.msra.mxu0 0
        %728 = vmatprep.subr.bf16.mxu0 0
        %729 = vmatpush1.bf16.xpose.msra.mxu0 0
        %730 = vmatprep.subr.bf16.mxu0 0
        %731 = vmatpush1.bf16.xpose.msra.mxu0 0
        %732 = vmatprep.subr.bf16.mxu0 0
        %733 = vmatpush1.bf16.xpose.msra.mxu0 0
        %734 = vmatprep.subr.bf16.mxu0 0
        %735 = vmatpush1.bf16.xpose.msra.mxu0 0
        %736 = vmatprep.subr.bf16.mxu0 0
        %737 = vmatpush1.bf16.xpose.msra.mxu0 0
        %738 = vmatprep.subr.bf16.mxu0 0
        %739 = vmatpush1.bf16.xpose.msra.mxu0 0
        %740 = vmatprep.subr.bf16.mxu0 0
        %741 = vmatpush1.bf16.xpose.msra.mxu0 0
        %742 = vmatprep.subr.bf16.mxu0 0
        %743 = vmatpush1.bf16.xpose.msra.mxu0 0
        %744 = vmatprep.subr.bf16.mxu0 0
        %745 = vmatpush1.bf16.xpose.msra.mxu0 0
        %746 = vmatprep.subr.bf16.mxu0 0
        %747 = vmatpush1.bf16.xpose.msra.mxu0 0
        %748 = vmatprep.subr.bf16.mxu0 0
        %749 = vmatpush1.bf16.xpose.msra.mxu0 0
        %750 = vmatprep.mubr.bf16.mxu0 0
        %751 = vmatmul.mubr.bf16.gmra.mrb[0].mxu0 %v713
        %v752 = vpop.f32.mrb[0].mxu0
        %v753 = vadd.f32 0.0, %v752
        %v754 = vpop.f32.mrb[0].mxu0
        %v755 = vpop.f32.mrb[0].mxu0
        %v756 = vpop.f32.mrb[0].mxu0
        %757 = vdwg.mxu0
        %759 = vrot.lane.b32.xlu0 %v706, 64
        %v760 = vpop.permute.xlu0 %759
        %v762 = vsel %vm281, %v706, 0
        %v765 = vsel %vm281, %v760, 0
        %767 = vmatprep.subr.bf16.mxu0 0
        %768 = vmatpush1.bf16.xpose.msra.mxu0 %v765
        %769 = vmatprep.subr.bf16.mxu0 0
        %770 = vmatpush1.bf16.xpose.msra.mxu0 0
        %771 = vmatprep.subr.bf16.mxu0 0
        %772 = vmatpush1.bf16.xpose.msra.mxu0 0
        %773 = vmatprep.subr.bf16.mxu0 0
        %774 = vmatpush1.bf16.xpose.msra.mxu0 0
        %775 = vmatprep.subr.bf16.mxu0 0
        %776 = vmatpush1.bf16.xpose.msra.mxu0 0
        %777 = vmatprep.subr.bf16.mxu0 0
        %778 = vmatpush1.bf16.xpose.msra.mxu0 0
        %779 = vmatprep.subr.bf16.mxu0 0
        %780 = vmatpush1.bf16.xpose.msra.mxu0 0
        %781 = vmatprep.subr.bf16.mxu0 0
        %782 = vmatpush1.bf16.xpose.msra.mxu0 0
        %783 = vmatprep.subr.bf16.mxu0 0
        %784 = vmatpush1.bf16.xpose.msra.mxu0 0
        %785 = vmatprep.subr.bf16.mxu0 0
        %786 = vmatpush1.bf16.xpose.msra.mxu0 0
        %787 = vmatprep.subr.bf16.mxu0 0
        %788 = vmatpush1.bf16.xpose.msra.mxu0 0
        %789 = vmatprep.subr.bf16.mxu0 0
        %790 = vmatpush1.bf16.xpose.msra.mxu0 0
        %791 = vmatprep.subr.bf16.mxu0 0
        %792 = vmatpush1.bf16.xpose.msra.mxu0 0
        %793 = vmatprep.subr.bf16.mxu0 0
        %794 = vmatpush1.bf16.xpose.msra.mxu0 0
        %795 = vmatprep.subr.bf16.mxu0 0
        %796 = vmatpush1.bf16.xpose.msra.mxu0 0
        %797 = vmatprep.subr.bf16.mxu0 0
        %798 = vmatpush1.bf16.xpose.msra.mxu0 0
        %799 = vmatprep.mubr.bf16.mxu0 0
        %800 = vmatmul.mubr.bf16.gmra.mrb[0].mxu0 %v762
        %v801 = vpop.f32.mrb[0].mxu0
        %v802 = vadd.f32 0.0, %v801
        %v803 = vpop.f32.mrb[0].mxu0
        %v804 = vpop.f32.mrb[0].mxu0
        %v805 = vpop.f32.mrb[0].mxu0
        %806 = vdwg.mxu0
        %vm807 = vcmask 64512
        %v808 = vsel %vm807, %v753, -inf
        %809 = vmax.xlane.f32.xlu0 %v808
        %v810 = vpop.xlane.xlu0 %809
        %v811 = vsel %vm807, %v802, -inf
        %812 = vmax.xlane.f32.xlu0 %v811
        %v813 = vpop.xlane.xlu0 %812
        %v814 = vsub.f32 %v753, %v810
        %v815 = vsub.f32 %v802, %v813
        %v816 = vmul.f32 %v814, 1.442695
        %v817 = vpow.pop %v816
        %v818 = vmul.f32 %v815, 1.442695
        %v819 = vpow.pop %v818
        %v820 = vsel %vm807, %v817, 0.0
        %821 = vadd.xlane.f32.xlu0 %v820
        %v822 = vpop.xlane.xlu0 %821
        %v823 = vsel %vm807, %v819, 0.0
        %824 = vadd.xlane.f32.xlu0 %v823
        %v825 = vpop.xlane.xlu0 %824
        %v826 = vrcp.pop %v822
        %v827 = vrcp.pop %v825
        %v828 = vmul.f32 %v817, %v826
        %v829 = vmul.f32 %v819, %v827
        %v830 = vpack.c.bf16 %v828, %v828
        %v831 = vpack.c.bf16 %v829, %v829
        %v833 = vsel %vm807, %v830, 0
        %vm835 = vcmask 1043456
        %v837 = vsel %vm835, %v707, 0
        %839 = vmatprep.subr.bf16.mxu0 0
        %840 = vmatpush1.bf16.msra.mxu0 %v837
        %841 = vmatprep.subr.bf16.mxu0 0
        %842 = vmatpush1.bf16.msra.mxu0 0
        %843 = vmatprep.subr.bf16.mxu0 0
        %844 = vmatpush1.bf16.msra.mxu0 0
        %845 = vmatprep.subr.bf16.mxu0 0
        %846 = vmatpush1.bf16.msra.mxu0 0
        %847 = vmatprep.subr.bf16.mxu0 0
        %848 = vmatpush1.bf16.msra.mxu0 0
        %849 = vmatprep.subr.bf16.mxu0 0
        %850 = vmatpush1.bf16.msra.mxu0 0
        %851 = vmatprep.subr.bf16.mxu0 0
        %852 = vmatpush1.bf16.msra.mxu0 0
        %853 = vmatprep.subr.bf16.mxu0 0
        %854 = vmatpush1.bf16.msra.mxu0 0
        %855 = vmatprep.subr.bf16.mxu0 0
        %856 = vmatpush1.bf16.msra.mxu0 0
        %857 = vmatprep.subr.bf16.mxu0 0
        %858 = vmatpush1.bf16.msra.mxu0 0
        %859 = vmatprep.subr.bf16.mxu0 0
        %860 = vmatpush1.bf16.msra.mxu0 0
        %861 = vmatprep.subr.bf16.mxu0 0
        %862 = vmatpush1.bf16.msra.mxu0 0
        %863 = vmatprep.subr.bf16.mxu0 0
        %864 = vmatpush1.bf16.msra.mxu0 0
        %865 = vmatprep.subr.bf16.mxu0 0
        %866 = vmatpush1.bf16.msra.mxu0 0
        %867 = vmatprep.subr.bf16.mxu0 0
        %868 = vmatpush1.bf16.msra.mxu0 0
        %869 = vmatprep.subr.bf16.mxu0 0
        %870 = vmatpush1.bf16.msra.mxu0 0
        %871 = vmatprep.mubr.bf16.mxu0 0
        %872 = vmatmul.mubr.bf16.gmra.mrb[0].mxu0 %v833
        %v873 = vpop.f32.mrb[0].mxu0
        %v874 = vadd.f32 0.0, %v873
        %v875 = vpop.f32.mrb[0].mxu0
        %v876 = vpop.f32.mrb[0].mxu0
        %v877 = vpop.f32.mrb[0].mxu0
        %878 = vdwg.mxu0
        %v880 = vsel %vm807, %v831, 0
        %v883 = vsel %vm835, %v708, 0
        %885 = vmatprep.subr.bf16.mxu0 0
        %886 = vmatpush1.bf16.msra.mxu0 %v883
        %887 = vmatprep.subr.bf16.mxu0 0
        %888 = vmatpush1.bf16.msra.mxu0 0
        %889 = vmatprep.subr.bf16.mxu0 0
        %890 = vmatpush1.bf16.msra.mxu0 0
        %891 = vmatprep.subr.bf16.mxu0 0
        %892 = vmatpush1.bf16.msra.mxu0 0
        %893 = vmatprep.subr.bf16.mxu0 0
        %894 = vmatpush1.bf16.msra.mxu0 0
        %895 = vmatprep.subr.bf16.mxu0 0
        %896 = vmatpush1.bf16.msra.mxu0 0
        %897 = vmatprep.subr.bf16.mxu0 0
        %898 = vmatpush1.bf16.msra.mxu0 0
        %899 = vmatprep.subr.bf16.mxu0 0
        %900 = vmatpush1.bf16.msra.mxu0 0
        %901 = vmatprep.subr.bf16.mxu0 0
        %902 = vmatpush1.bf16.msra.mxu0 0
        %903 = vmatprep.subr.bf16.mxu0 0
        %904 = vmatpush1.bf16.msra.mxu0 0
        %905 = vmatprep.subr.bf16.mxu0 0
        %906 = vmatpush1.bf16.msra.mxu0 0
        %907 = vmatprep.subr.bf16.mxu0 0
        %908 = vmatpush1.bf16.msra.mxu0 0
        %909 = vmatprep.subr.bf16.mxu0 0
        %910 = vmatpush1.bf16.msra.mxu0 0
        %911 = vmatprep.subr.bf16.mxu0 0
        %912 = vmatpush1.bf16.msra.mxu0 0
        %913 = vmatprep.subr.bf16.mxu0 0
        %914 = vmatpush1.bf16.msra.mxu0 0
        %915 = vmatprep.subr.bf16.mxu0 0
        %916 = vmatpush1.bf16.msra.mxu0 0
        %917 = vmatprep.mubr.bf16.mxu0 0
        %918 = vmatmul.mubr.bf16.gmra.mrb[0].mxu0 %v880
        %v919 = vpop.f32.mrb[0].mxu0
        %v920 = vadd.f32 0.0, %v919
        %v921 = vpop.f32.mrb[0].mxu0
        %v922 = vpop.f32.mrb[0].mxu0
        %v923 = vpop.f32.mrb[0].mxu0
        %924 = vdwg.mxu0
        %v925 = vpack.c.bf16 %v920, %v874
        %v926 = vld [vmem:[#allocation2 + $0x14] sm:$0xf]
        %v927 = vld [vmem:[#allocation2 + $0x30] sm:$0xf]
        %v928 = vld [vmem:[#allocation2 + $0x4c] sm:$0xf]
        %v929 = vld [vmem:[#allocation2 + $0x68] sm:$0xf]
        %v930 = vld [vmem:[#allocation2 + $0x84] sm:$0xf]
        %v931 = vld [vmem:[#allocation2 + $0xa0] sm:$0xf]
        %v932 = vld [vmem:[#allocation2 + $0xbc] sm:$0xf]
        %v933 = vld [vmem:[#allocation2 + $0xd8] sm:$0xf]
        %v934 = vld [vmem:[%s3 + $0x6] sm:$0x1]
        %v936 = vlaneseq
        %v937 = vshrl.u32 %v936, 7
        %v938 = vsub.s32 0, %v937
        %v939 = vrot.slane %v934, %v938
        %v949 = vunpack.c.l.b16 %v926
        %v950 = vunpack.c.l.b16 %v927
        %v951 = vunpack.c.l.b16 %v928
        %v952 = vunpack.c.l.b16 %v929
        %v953 = vunpack.c.l.b16 %v930
        %v954 = vunpack.c.l.b16 %v931
        %v955 = vunpack.c.l.b16 %v932
        %v956 = vunpack.c.l.b16 %v933
        %v957 = vpack.c.b16 %v950, %v949
        %v958 = vpack.c.b16 %v952, %v951
        %v959 = vpack.c.b16 %v954, %v953
        %v960 = vpack.c.b16 %v956, %v955
        %v966 = vsel %vm281, %v925, 0
        %968 = vmatprep.subr.bf16.mxu0 0
        %969 = vmatpush1.bf16.msra.mxu0 %v957
        %970 = vmatprep.subr.bf16.mxu0 0
        %971 = vmatpush1.bf16.msra.mxu0 %v958
        %972 = vmatprep.subr.bf16.mxu0 0
        %973 = vmatpush1.bf16.msra.mxu0 %v959
        %974 = vmatprep.subr.bf16.mxu0 0
        %975 = vmatpush1.bf16.msra.mxu0 %v960
        %976 = vmatprep.subr.bf16.mxu0 0
        %977 = vmatpush1.bf16.msra.mxu0 0
        %978 = vmatprep.subr.bf16.mxu0 0
        %979 = vmatpush1.bf16.msra.mxu0 0
        %980 = vmatprep.subr.bf16.mxu0 0
        %981 = vmatpush1.bf16.msra.mxu0 0
        %982 = vmatprep.subr.bf16.mxu0 0
        %983 = vmatpush1.bf16.msra.mxu0 0
        %984 = vmatprep.subr.bf16.mxu0 0
        %985 = vmatpush1.bf16.msra.mxu0 0
        %986 = vmatprep.subr.bf16.mxu0 0
        %987 = vmatpush1.bf16.msra.mxu0 0
        %988 = vmatprep.subr.bf16.mxu0 0
        %989 = vmatpush1.bf16.msra.mxu0 0
        %990 = vmatprep.subr.bf16.mxu0 0
        %991 = vmatpush1.bf16.msra.mxu0 0
        %992 = vmatprep.subr.bf16.mxu0 0
        %993 = vmatpush1.bf16.msra.mxu0 0
        %994 = vmatprep.subr.bf16.mxu0 0
        %995 = vmatpush1.bf16.msra.mxu0 0
        %996 = vmatprep.subr.bf16.mxu0 0
        %997 = vmatpush1.bf16.msra.mxu0 0
        %998 = vmatprep.subr.bf16.mxu0 0
        %999 = vmatpush1.bf16.msra.mxu0 0
        %1000 = vmatprep.mubr.bf16.mxu0 0
        %1001 = vmatmul.mubr.bf16.gmra.mrb[0].mxu0 %v966
        %v1002 = vpop.f32.mrb[0].mxu0
        %v1003 = vadd.f32 %v939, %v1002
        %v1004 = vpop.f32.mrb[0].mxu0
        %v1005 = vpop.f32.mrb[0].mxu0
        %v1006 = vadd.f32 %v939, %v1005
        %v1007 = vpop.f32.mrb[0].mxu0
        %1008 = vdwg.mxu0
        %v1009 = vadd.f32 %v568, %v1003
        %v1010 = vadd.f32 %v571, %v1006
        %v1011 = vsel %vm281, %v1009, 0.0
        %1012 = vadd.xlane.f32.xlu0 %v1011
        %v1013 = vpop.xlane.xlu0 %1012
        %v1014 = vsel %vm281, %v1010, 0.0
        %1015 = vadd.xlane.f32.xlu0 %v1014
        %v1016 = vpop.xlane.xlu0 %1015
        %v1017 = vrcp.pop 64.0
        %v1018 = vmul.f32 %v1013, %v1017
        %v1019 = vmul.f32 %v1016, %v1017
        %v1020 = vsub.f32 %v1009, %v1018
        %v1021 = vsub.f32 %v1010, %v1019
        %v1022 = vmul.f32 %v1020, %v1020
        %v1023 = vmul.f32 %v1021, %v1021
        %v1024 = vsel %vm281, %v1022, 0.0
        %1025 = vadd.xlane.f32.xlu0 %v1024
        %v1026 = vpop.xlane.xlu0 %1025
        %v1027 = vsel %vm281, %v1023, 0.0
        %1028 = vadd.xlane.f32.xlu0 %v1027
        %v1029 = vpop.xlane.xlu0 %1028
        %v1030 = vmul.f32 %v1026, %v1017
        %v1031 = vmul.f32 %v1029, %v1017
        %v1032 = vadd.f32 %v1030, 1e-05
        %v1033 = vadd.f32 %v1031, 1e-05
        %v1034 = vrsqrt.pop %v1032
        %v1035 = vrsqrt.pop %v1033
        %v1036 = vmul.f32 %v1020, %v1034
        %v1037 = vmul.f32 %v1021, %v1035
        %v1038 = vld [vmem:[%s3 + $0x7] sm:$0x1]
        %v1040 = vlaneseq
        %v1041 = vshrl.u32 %v1040, 7
        %v1042 = vsub.s32 0, %v1041
        %v1043 = vrot.slane %v1038, %v1042
        %v1045 = vmul.f32 %v1036, %v1043
        %v1046 = vmul.f32 %v1037, %v1043
        %v1047 = vld [vmem:[%s3 + $0x8] sm:$0x1]
        %v1049 = vlaneseq
        %v1050 = vshrl.u32 %v1049, 7
        %v1051 = vsub.s32 0, %v1050
        %v1052 = vrot.slane %v1047, %v1051
        %v1054 = vadd.f32 %v1045, %v1052
        %v1055 = vadd.f32 %v1046, %v1052
        %v1056 = vsel %vm281, %v1054, 0.0
        %v1057 = vrot.slane %v1056, 4
        %v1058 = vadd.f32 %v1056, %v1057
        %v1059 = vrot.slane %v1058, 2
        %v1060 = vadd.f32 %v1058, %v1059
        %v1061 = vrot.slane %v1060, 1
        %v1062 = vadd.f32 %v1060, %v1061
        %v1063 = vsel %vm281, %v1055, 0.0
        %v1064 = vrot.slane %v1063, 4
        %v1065 = vadd.f32 %v1063, %v1064
        %v1066 = vrot.slane %v1065, 2
        %v1067 = vadd.f32 %v1065, %v1066
        %v1068 = vrot.slane %v1067, 1
        %v1069 = vadd.f32 %v1067, %v1068
        %v1070 = vrcp.pop 8.0
        %v1071 = vmul.f32 %v1062, %v1070
        %v1072 = vmul.f32 %v1069, %v1070
        %v1073 = vpack.c.bf16 %v1071, %v1071
        %v1074 = vpack.c.bf16 %v1072, %v1072
        %v1075 = vld [vmem:[#allocation2 + $0x18] sm:$0xf]
        %v1076 = vld [vmem:[#allocation2 + $0x34] sm:$0xf]
        %v1077 = vld [vmem:[#allocation2 + $0x50] sm:$0xf]
        %v1078 = vld [vmem:[#allocation2 + $0x6c] sm:$0xf]
        %v1079 = vld [vmem:[#allocation2 + $0x88] sm:$0xf]
        %v1080 = vld [vmem:[#allocation2 + $0xa4] sm:$0xf]
        %v1081 = vld [vmem:[#allocation2 + $0xc0] sm:$0xf]
        %v1082 = vld [vmem:[#allocation2 + $0xdc] sm:$0xf]
        %v1083 = vld [vmem:[%s3 + $0x9] sm:$0x1]
        %v1085 = vlaneseq
        %v1086 = vshrl.u32 %v1085, 7
        %v1087 = vsub.s32 0, %v1086
        %v1088 = vrot.slane %v1083, %v1087
        %v1092 = vunpack.c.l.b16 %v1073
        %v1093 = vunpack.c.l.b16 %v1074
        %vm1094 = vcmask 1041409
        %v1095 = vsel %vm1094, %v1093, %v1092
        %v1096 = vpack.c.b16 %v1095, %v1095
        %v1105 = vunpack.c.l.b16 %v1075
        %v1106 = vunpack.c.l.b16 %v1076
        %v1107 = vunpack.c.l.b16 %v1077
        %v1108 = vunpack.c.l.b16 %v1078
        %v1109 = vunpack.c.l.b16 %v1079
        %v1110 = vunpack.c.l.b16 %v1080
        %v1111 = vunpack.c.l.b16 %v1081
        %v1112 = vunpack.c.l.b16 %v1082
        %v1113 = vpack.c.b16 %v1106, %v1105
        %v1114 = vpack.c.b16 %v1108, %v1107
        %v1115 = vpack.c.b16 %v1110, %v1109
        %v1116 = vpack.c.b16 %v1112, %v1111
        %v1122 = vsel %vm281, %v1096, 0
        %1124 = vmatprep.subr.bf16.mxu0 0
        %1125 = vmatpush1.bf16.msra.mxu0 %v1113
        %1126 = vmatprep.subr.bf16.mxu0 0
        %1127 = vmatpush1.bf16.msra.mxu0 %v1114
        %1128 = vmatprep.subr.bf16.mxu0 0
        %1129 = vmatpush1.bf16.msra.mxu0 %v1115
        %1130 = vmatprep.subr.bf16.mxu0 0
        %1131 = vmatpush1.bf16.msra.mxu0 %v1116
        %1132 = vmatprep.subr.bf16.mxu0 0
        %1133 = vmatpush1.bf16.msra.mxu0 0
        %1134 = vmatprep.subr.bf16.mxu0 0
        %1135 = vmatpush1.bf16.msra.mxu0 0
        %1136 = vmatprep.subr.bf16.mxu0 0
        %1137 = vmatpush1.bf16.msra.mxu0 0
        %1138 = vmatprep.subr.bf16.mxu0 0
        %1139 = vmatpush1.bf16.msra.mxu0 0
        %1140 = vmatprep.subr.bf16.mxu0 0
        %1141 = vmatpush1.bf16.msra.mxu0 0
        %1142 = vmatprep.subr.bf16.mxu0 0
        %1143 = vmatpush1.bf16.msra.mxu0 0
        %1144 = vmatprep.subr.bf16.mxu0 0
        %1145 = vmatpush1.bf16.msra.mxu0 0
        %1146 = vmatprep.subr.bf16.mxu0 0
        %1147 = vmatpush1.bf16.msra.mxu0 0
        %1148 = vmatprep.subr.bf16.mxu0 0
        %1149 = vmatpush1.bf16.msra.mxu0 0
        %1150 = vmatprep.subr.bf16.mxu0 0
        %1151 = vmatpush1.bf16.msra.mxu0 0
        %1152 = vmatprep.subr.bf16.mxu0 0
        %1153 = vmatpush1.bf16.msra.mxu0 0
        %1154 = vmatprep.subr.bf16.mxu0 0
        %1155 = vmatpush1.bf16.msra.mxu0 0
        %1156 = vmatprep.mubr.bf16.mxu0 0
        %1157 = vmatmul.mubr.bf16.gmra.mrb[0].mxu0 %v1122
        %v1158 = vpop.f32.mrb[0].mxu0
        %v1159 = vadd.f32 %v1088, %v1158
        %v1160 = vpop.f32.mrb[0].mxu0
        %v1161 = vpop.f32.mrb[0].mxu0
        %v1162 = vpop.f32.mrb[0].mxu0
        %1163 = vdwg.mxu0
        %v1164 = vlaneseq
        %v1165 = vshrl.u32 %v1164, 7
        %v1166 = vlaneseq
        %v1167 = vand.u32 %v1166, 127
        %vm1168 = vcmp.eq.s32.totalorder %v1165, 0
        %vm1169 = vcmp.eq.s32.totalorder %v1167, 2
        %vm1170 = vmand %vm1168, %vm1169
        %v1171 = vstv %s597
        %v1172 = vsel %vm1170, %v1171, %v1159
        %1173 = vst [vmem:[%s206] sm:$0x3] %v1172
        %s1174 = sand.u32 %s116, 1
        %s1175 = scalar_lea.sflag [#allocation4], %s1174
        %s1176 = sand.u32 %s116, 1
        %s1177 = smul.addr %s1176, 2
        %s1178 = scalar_lea.vmem [#allocation5], %s1177
        // Predicated region
        $region41: #{tpu_custom_call.1} parent=35 // pred_check
          %p1179 = pneg %p126
        $region42: #{tpu_custom_call.1} parent=35 // pred_check_branch
          %1181 = sbr.rel (%p1179) target = $region44
        $region43: #{tpu_custom_call.1} parent=35 // pred_region
          %s1183 = ssub.s32 32, 32
          %1184 = vsyncadd %s1175, %s1183
          %s1185 = smul.addr %s19, 32
          %s1186 = scalar_lea.hbm %s4, %s1185
          %s1188 = sshll.u32 %s1178, 4
          %s1189 = int_to_ptr.vmem [resolvable:$true] %s1188
          %1191 = dma.vmem_to_hbm [thread:$0]  %s1189, 32, %s1186, %s1175
        $region44: #{tpu_custom_call.1} parent=35 // pred_fallthru
          _
      $region36: #{tpu_custom_call.1} parent=5 // pred_fallthru
        _
      %p1192 = scmp.le.s32.totalorder 2, %s14
      // Predicated region
      $region45: #{tpu_custom_call.1} parent=5 // pred_check
        %p1193 = pneg %p1192
      $region46: #{tpu_custom_call.1} parent=5 // pred_check_branch
        %1195 = sbr.rel (%p1193) target = $region48
      $region47: #{tpu_custom_call.1} parent=5 // pred_region
        %s1196 = ssub.s32 %s14, 2
        // Predicated region
        $region49: #{tpu_custom_call.1} parent=47 // pred_check
          %p1197 = pneg %p132
        $region50: #{tpu_custom_call.1} parent=47 // pred_check_branch
          %1199 = sbr.rel (%p1197) target = $region52
        $region51: #{tpu_custom_call.1} parent=47 // pred_region
          %s1200 = sand.u32 %s117, 1
          %s1201 = scalar_lea.sflag [#allocation4], %s1200
          %s1202 = sand.u32 %s117, 1
          %s1203 = smul.addr %s1202, 2
          %s1204 = scalar_lea.vmem [#allocation5], %s1203
          %1205 = dma.done %s1201, 32
        $region52: #{tpu_custom_call.1} parent=47 // pred_fallthru
          _
      $region48: #{tpu_custom_call.1} parent=5 // pred_fallthru
        _
    $region6: #{tpu_custom_call.1} parent=1 // loop_footer
      %s18 = sadd.s32 1, %s14
    $region7: #{tpu_custom_call.1} parent=1 // loop_footer_branch
      %13 = sbr.rel target = $region3
    $region8: #{tpu_custom_call.1} parent=1 // loop_exit
      _
    %1206 = vsyncpa [#allocation3], 1
    %s1207 = scalar_lea.sflag [#allocation3], 1
    %1208 = vsyncpa %s1207, 1
    %1209 = vsyncpa [#allocation4], 1
    %s1210 = scalar_lea.sflag [#allocation4], 1
    %1211 = vsyncpa %s1210, 1

</llo_original>
